<compile_context>
chip_gen: v7x
topology: tpu7x:2x2x1
jax: 0.10.0
libtpu: 0.0.40
codegen_flags: <defaults>
</compile_context>

<pallas_src>
import functools

import jax
import jax.numpy as jnp
from jax import lax
from jax.experimental import pallas as pl
from jax.experimental.pallas import tpu as pltpu


def _convlstm_kernel(x_ref, h_ref, c_ref, w_ref, b_ref,
                     hn_ref, cn_ref, patch_ref,
                     *, CIN, HID, KH, KW, WP, QF):
    """One batch element. Flat, lane-dense layout: spatial on the lane dim.

    x_ref : (1, CIN, SP)   zero-padded input, flattened (row stride WP)
    h_ref : (1, HID, SP)   zero-padded hidden state, flattened
    c_ref : (1, HID, QF)   cell state in q-space (q = i*WP + j, j < W valid)
    w_ref : (4*HID, KH*KW*(CIN+HID))  weight slab
    b_ref : (4*HID, 1)     bias
    hn/cn : (1, HID, QF)   outputs in q-space
    patch_ref : (KH*KW*(CIN+HID), QF) im2col scratch (fully rewritten each step)
    """
    CT = CIN + HID
    xf = x_ref[0]                      # (CIN, SP)
    hf = h_ref[0]                      # (HID, SP)

    # Build the im2col patch: row order (kh, kw, [x-channels, h-channels])
    # matches the weight-slab layout produced by the wrapper.
    for kh in range(KH):
        for kw in range(KW):
            off = kh * WP + kw                         # static lane offset
            row = (kh * KW + kw) * CT                  # static sublane offset
            patch_ref[row:row + CIN, :] = xf[:, off:off + QF]
            patch_ref[row + CIN:row + CT, :] = hf[:, off:off + QF]

    # Single MXU GEMM: (4*HID, K) @ (K, QF) -> (4*HID, QF), lane-dense output.
    cc = jnp.dot(w_ref[...], patch_ref[...],
                 preferred_element_type=jnp.float32)
    cc = cc + b_ref[...].astype(jnp.float32)           # broadcast over lanes

    # gate order matches torch.split(cc, hid, dim=1): i, f, o, g
    ig = jax.nn.sigmoid(cc[0 * HID:1 * HID, :])
    fg = jax.nn.sigmoid(cc[1 * HID:2 * HID, :])
    og = jax.nn.sigmoid(cc[2 * HID:3 * HID, :])
    gg = jnp.tanh(cc[3 * HID:4 * HID, :])

    c_next = fg * c_ref[0].astype(jnp.float32) + ig * gg
    h_next = og * jnp.tanh(c_next)

    cn_ref[0] = c_next.astype(cn_ref.dtype)
    hn_ref[0] = h_next.astype(hn_ref.dtype)


def convlstm_step(x_nchw, h_nchw, c_nchw, w_oihw, bias_vec, kernel_size):
    """One ConvLSTM cell step. Inputs/outputs are NCHW (PyTorch convention)."""
    B, CIN, H, W = x_nchw.shape
    HID = h_nchw.shape[1]
    KH, KW = kernel_size
    assert KH % 2 == 1 and KW % 2 == 1, "odd kernel sizes only ('same' padding)"
    PH, PW = KH // 2, KW // 2
    CT = CIN + HID
    KTOT = KH * KW * CT
    dt = x_nchw.dtype

    # Padded row width: >= W + 2*PW, preferring H*WP to be a multiple of 128
    # (fully unmasked, vreg-aligned lane dim in the kernel).
    WP = W + 2 * PW
    for cand in range(WP, WP + 129):
        if (H * cand) % 128 == 0:
            WP = cand
            break
    QF = H * WP                                        # flat q-space size
    SP = pl.cdiv((KH - 1) * WP + (KW - 1) + QF, 128) * 128
    n_rows = pl.cdiv(SP, WP)

    # --- XLA-side layout glue (padding / flattening; no in-kernel zeroing) ---
    def pad_flat(a, C):
        buf = jnp.zeros((B, C, n_rows, WP), dt)
        buf = buf.at[:, :, PH:PH + H, PW:PW + W].set(a)
        return buf.reshape(B, C, n_rows * WP)[:, :, :SP]

    x_flat = pad_flat(x_nchw, CIN)                     # (B, CIN, SP)
    h_flat = pad_flat(h_nchw, HID)                     # (B, HID, SP)
    c_q = (jnp.zeros((B, HID, H, WP), dt)
           .at[:, :, :, :W].set(c_nchw)
           .reshape(B, HID, QF))                       # (B, HID, QF)

    # OIHW -> (4*HID, KH, KW, CIN+HID) -> (4*HID, KTOT); channel order within a
    # tap is [x-channels, h-channels], matching torch.cat([x, h], dim=1).
    w_slab = jnp.transpose(w_oihw, (0, 2, 3, 1)).reshape(4 * HID, KTOT)
    b2 = bias_vec.reshape(4 * HID, 1)

    kern = functools.partial(_convlstm_kernel, CIN=CIN, HID=HID,
                             KH=KH, KW=KW, WP=WP, QF=QF)

    grid_spec = pltpu.PrefetchScalarGridSpec(
        num_scalar_prefetch=0,
        grid=(B,),
        in_specs=[
            pl.BlockSpec((1, CIN, SP), lambda b: (b, 0, 0)),
            pl.BlockSpec((1, HID, SP), lambda b: (b, 0, 0)),
            pl.BlockSpec((1, HID, QF), lambda b: (b, 0, 0)),
            pl.BlockSpec((4 * HID, KTOT), lambda b: (0, 0)),
            pl.BlockSpec((4 * HID, 1), lambda b: (0, 0)),
        ],
        out_specs=[
            pl.BlockSpec((1, HID, QF), lambda b: (b, 0, 0)),
            pl.BlockSpec((1, HID, QF), lambda b: (b, 0, 0)),
        ],
        scratch_shapes=[
            pltpu.VMEM((KTOT, QF), jnp.float32),       # im2col patch
        ],
    )

    hn_q, cn_q = pl.pallas_call(
        kern,
        out_shape=(jax.ShapeDtypeStruct((B, HID, QF), dt),
                   jax.ShapeDtypeStruct((B, HID, QF), dt)),
        grid_spec=grid_spec,
        input_output_aliases={2: 1},                   # c_q buffer -> c_next
        compiler_params=pltpu.CompilerParams(
            dimension_semantics=("parallel",)),
    )(x_flat, h_flat, c_q, w_slab, b2)

    # q-space -> NCHW (XLA metadata ops)
    hn = hn_q.reshape(B, HID, H, WP)[:, :, :, :W]
    cn = cn_q.reshape(B, HID, H, WP)[:, :, :, :W]
    return hn, cn


def convlstm_ref(x, h, c, w_oihw, bias_vec):
    """Pure-JAX reference mirroring the PyTorch forward (NCHW)."""
    com = jnp.concatenate([x, h], axis=1)
    w_hwio = jnp.transpose(w_oihw, (2, 3, 1, 0))
    cc = lax.conv_general_dilated(
        jnp.transpose(com, (0, 2, 3, 1)), w_hwio, (1, 1), "SAME",
        dimension_numbers=("NHWC", "HWIO", "NHWC"))
    cc = cc + bias_vec[None, None, None, :]
    cc = jnp.transpose(cc, (0, 3, 1, 2))
    cc_i, cc_f, cc_o, cc_g = jnp.split(cc, 4, axis=1)
    i = jax.nn.sigmoid(cc_i)
    f = jax.nn.sigmoid(cc_f)
    o = jax.nn.sigmoid(cc_o)
    g = jnp.tanh(cc_g)
    c_next = f * c + i * g
    h_next = o * jnp.tanh(c_next)
    return h_next, c_next


if __name__ == "__main__":
    B, CIN, HID, H, W = 2, 4, 8, 16, 16
    KS = (3, 3)

    key = jax.random.PRNGKey(0)
    k1, k2, k3, k4, k5 = jax.random.split(key, 5)
    x = jax.random.normal(k1, (B, CIN, H, W), jnp.float32)
    h0 = jax.random.normal(k2, (B, HID, H, W), jnp.float32)
    c0 = jax.random.normal(k3, (B, HID, H, W), jnp.float32)

    # nn.Conv2d(inp+hid, 4*hid, ks, padding=ks//2, bias=True) weights,
    # deterministic PyTorch-style uniform(-1/sqrt(fan_in), 1/sqrt(fan_in)).
    fan_in = (CIN + HID) * KS[0] * KS[1]
    bound = 1.0 / (fan_in ** 0.5)
    w = jax.random.uniform(k4, (4 * HID, CIN + HID, KS[0], KS[1]),
                           jnp.float32, -bound, bound)
    bias = jax.random.uniform(k5, (4 * HID,), jnp.float32, -bound, bound)

    h_next, c_next = convlstm_step(x, h0, c0, w, bias, KS)
    jax.block_until_ready((h_next, c_next))

    h_ref_, c_ref_ = convlstm_ref(x, h0, c0, w, bias)
    assert h_next.shape == (B, HID, H, W) and c_next.shape == (B, HID, H, W)
    assert jnp.allclose(h_next, h_ref_, atol=1e-4, rtol=1e-4)
    assert jnp.allclose(c_next, c_ref_, atol=1e-4, rtol=1e-4)
    print("KERNEL_OK")
</pallas_src>

<mosaic_0001>
module attributes {stable_mosaic.version = 11 : i64} {
  func.func @_convlstm_kernel(%arg0: i32, %arg1: memref<1x4x512xf32, #tpu.memory_space<vmem>>, %arg2: memref<1x8x512xf32, #tpu.memory_space<vmem>>, %arg3: memref<1x8x384xf32, #tpu.memory_space<vmem>>, %arg4: memref<32x108xf32, #tpu.memory_space<vmem>>, %arg5: memref<32x1xf32, #tpu.memory_space<vmem>>, %arg6: memref<1x8x384xf32, #tpu.memory_space<vmem>>, %arg7: memref<1x8x384xf32, #tpu.memory_space<vmem>>, %arg8: memref<108x384xf32, #tpu.memory_space<vmem>>) attributes {dimension_semantics = [#tpu.dimension_semantics<parallel>], iteration_bounds = array<i64: 2>, scalar_prefetch = 0 : i64, scratch_operands = 1 : i64, tpu.core_type = #tpu.core_type<tc>, window_params = [{transform_indices = @transform_0, window_bounds = array<i64: 1, 4, 512>}, {transform_indices = @transform_1, window_bounds = array<i64: 1, 8, 512>}, {transform_indices = @transform_2, window_bounds = array<i64: 1, 8, 384>}, {pipeline_mode = #tpu.pipeline_mode<synchronous>, transform_indices = @transform_3, window_bounds = array<i64: 32, 108>}, {pipeline_mode = #tpu.pipeline_mode<synchronous>, transform_indices = @transform_4, window_bounds = array<i64: 32, 1>}, {transform_indices = @transform_5, window_bounds = array<i64: 1, 8, 384>}, {transform_indices = @transform_6, window_bounds = array<i64: 1, 8, 384>}]} {
    %c0 = arith.constant 0 : index
    %c0_0 = arith.constant 0 : index
    %c0_1 = arith.constant 0 : index
    %0 = vector.load %arg1[%c0, %c0_0, %c0_1] : memref<1x4x512xf32, #tpu.memory_space<vmem>>, vector<1x4x512xf32>
    %1 = vector.shape_cast %0 : vector<1x4x512xf32> to vector<4x512xf32>
    %c0_2 = arith.constant 0 : index
    %c0_3 = arith.constant 0 : index
    %c0_4 = arith.constant 0 : index
    %2 = vector.load %arg2[%c0_2, %c0_3, %c0_4] : memref<1x8x512xf32, #tpu.memory_space<vmem>>, vector<1x8x512xf32>
    %3 = vector.shape_cast %2 : vector<1x8x512xf32> to vector<8x512xf32>
    %4 = vector.extract_strided_slice %1 {offsets = [0, 0], sizes = [4, 384], strides = [1, 1]} : vector<4x512xf32> to vector<4x384xf32>
    %c0_5 = arith.constant 0 : index
    %c0_6 = arith.constant 0 : index
    %5 = vector.load %arg8[%c0_5, %c0_6] : memref<108x384xf32, #tpu.memory_space<vmem>>, vector<4x384xf32>
    tpu.vector_store %arg8[%c0_5, %c0_6], %4 {strides = array<i32>} : memref<108x384xf32, #tpu.memory_space<vmem>>, vector<4x384xf32>,
    %6 = vector.extract_strided_slice %3 {offsets = [0, 0], sizes = [8, 384], strides = [1, 1]} : vector<8x512xf32> to vector<8x384xf32>
    %c4 = arith.constant 4 : index
    %c0_7 = arith.constant 0 : index
    %7 = vector.load %arg8[%c4, %c0_7] : memref<108x384xf32, #tpu.memory_space<vmem>>, vector<8x384xf32>
    tpu.vector_store %arg8[%c4, %c0_7], %6 {strides = array<i32>} : memref<108x384xf32, #tpu.memory_space<vmem>>, vector<8x384xf32>,
    %8 = vector.extract_strided_slice %1 {offsets = [0, 1], sizes = [4, 384], strides = [1, 1]} : vector<4x512xf32> to vector<4x384xf32>
    %c12 = arith.constant 12 : index
    %c0_8 = arith.constant 0 : index
    %9 = vector.load %arg8[%c12, %c0_8] : memref<108x384xf32, #tpu.memory_space<vmem>>, vector<4x384xf32>
    tpu.vector_store %arg8[%c12, %c0_8], %8 {strides = array<i32>} : memref<108x384xf32, #tpu.memory_space<vmem>>, vector<4x384xf32>,
    %10 = vector.extract_strided_slice %3 {offsets = [0, 1], sizes = [8, 384], strides = [1, 1]} : vector<8x512xf32> to vector<8x384xf32>
    %c16 = arith.constant 16 : index
    %c0_9 = arith.constant 0 : index
    %11 = vector.load %arg8[%c16, %c0_9] : memref<108x384xf32, #tpu.memory_space<vmem>>, vector<8x384xf32>
    tpu.vector_store %arg8[%c16, %c0_9], %10 {strides = array<i32>} : memref<108x384xf32, #tpu.memory_space<vmem>>, vector<8x384xf32>,
    %12 = vector.extract_strided_slice %1 {offsets = [0, 2], sizes = [4, 384], strides = [1, 1]} : vector<4x512xf32> to vector<4x384xf32>
    %c24 = arith.constant 24 : index
    %c0_10 = arith.constant 0 : index
    %13 = vector.load %arg8[%c24, %c0_10] : memref<108x384xf32, #tpu.memory_space<vmem>>, vector<4x384xf32>
    tpu.vector_store %arg8[%c24, %c0_10], %12 {strides = array<i32>} : memref<108x384xf32, #tpu.memory_space<vmem>>, vector<4x384xf32>,
    %14 = vector.extract_strided_slice %3 {offsets = [0, 2], sizes = [8, 384], strides = [1, 1]} : vector<8x512xf32> to vector<8x384xf32>
    %c28 = arith.constant 28 : index
    %c0_11 = arith.constant 0 : index
    %15 = vector.load %arg8[%c28, %c0_11] : memref<108x384xf32, #tpu.memory_space<vmem>>, vector<8x384xf32>
    tpu.vector_store %arg8[%c28, %c0_11], %14 {strides = array<i32>} : memref<108x384xf32, #tpu.memory_space<vmem>>, vector<8x384xf32>,
    %16 = vector.extract_strided_slice %1 {offsets = [0, 24], sizes = [4, 384], strides = [1, 1]} : vector<4x512xf32> to vector<4x384xf32>
    %c36 = arith.constant 36 : index
    %c0_12 = arith.constant 0 : index
    %17 = vector.load %arg8[%c36, %c0_12] : memref<108x384xf32, #tpu.memory_space<vmem>>, vector<4x384xf32>
    tpu.vector_store %arg8[%c36, %c0_12], %16 {strides = array<i32>} : memref<108x384xf32, #tpu.memory_space<vmem>>, vector<4x384xf32>,
    %18 = vector.extract_strided_slice %3 {offsets = [0, 24], sizes = [8, 384], strides = [1, 1]} : vector<8x512xf32> to vector<8x384xf32>
    %c40 = arith.constant 40 : index
    %c0_13 = arith.constant 0 : index
    %19 = vector.load %arg8[%c40, %c0_13] : memref<108x384xf32, #tpu.memory_space<vmem>>, vector<8x384xf32>
    tpu.vector_store %arg8[%c40, %c0_13], %18 {strides = array<i32>} : memref<108x384xf32, #tpu.memory_space<vmem>>, vector<8x384xf32>,
    %20 = vector.extract_strided_slice %1 {offsets = [0, 25], sizes = [4, 384], strides = [1, 1]} : vector<4x512xf32> to vector<4x384xf32>
    %c48 = arith.constant 48 : index
    %c0_14 = arith.constant 0 : index
    %21 = vector.load %arg8[%c48, %c0_14] : memref<108x384xf32, #tpu.memory_space<vmem>>, vector<4x384xf32>
    tpu.vector_store %arg8[%c48, %c0_14], %20 {strides = array<i32>} : memref<108x384xf32, #tpu.memory_space<vmem>>, vector<4x384xf32>,
    %22 = vector.extract_strided_slice %3 {offsets = [0, 25], sizes = [8, 384], strides = [1, 1]} : vector<8x512xf32> to vector<8x384xf32>
    %c52 = arith.constant 52 : index
    %c0_15 = arith.constant 0 : index
    %23 = vector.load %arg8[%c52, %c0_15] : memref<108x384xf32, #tpu.memory_space<vmem>>, vector<8x384xf32>
    tpu.vector_store %arg8[%c52, %c0_15], %22 {strides = array<i32>} : memref<108x384xf32, #tpu.memory_space<vmem>>, vector<8x384xf32>,
    %24 = vector.extract_strided_slice %1 {offsets = [0, 26], sizes = [4, 384], strides = [1, 1]} : vector<4x512xf32> to vector<4x384xf32>
    %c60 = arith.constant 60 : index
    %c0_16 = arith.constant 0 : index
    %25 = vector.load %arg8[%c60, %c0_16] : memref<108x384xf32, #tpu.memory_space<vmem>>, vector<4x384xf32>
    tpu.vector_store %arg8[%c60, %c0_16], %24 {strides = array<i32>} : memref<108x384xf32, #tpu.memory_space<vmem>>, vector<4x384xf32>,
    %26 = vector.extract_strided_slice %3 {offsets = [0, 26], sizes = [8, 384], strides = [1, 1]} : vector<8x512xf32> to vector<8x384xf32>
    %c64 = arith.constant 64 : index
    %c0_17 = arith.constant 0 : index
    %27 = vector.load %arg8[%c64, %c0_17] : memref<108x384xf32, #tpu.memory_space<vmem>>, vector<8x384xf32>
    tpu.vector_store %arg8[%c64, %c0_17], %26 {strides = array<i32>} : memref<108x384xf32, #tpu.memory_space<vmem>>, vector<8x384xf32>,
    %28 = vector.extract_strided_slice %1 {offsets = [0, 48], sizes = [4, 384], strides = [1, 1]} : vector<4x512xf32> to vector<4x384xf32>
    %c72 = arith.constant 72 : index
    %c0_18 = arith.constant 0 : index
    %29 = vector.load %arg8[%c72, %c0_18] : memref<108x384xf32, #tpu.memory_space<vmem>>, vector<4x384xf32>
    tpu.vector_store %arg8[%c72, %c0_18], %28 {strides = array<i32>} : memref<108x384xf32, #tpu.memory_space<vmem>>, vector<4x384xf32>,
    %30 = vector.extract_strided_slice %3 {offsets = [0, 48], sizes = [8, 384], strides = [1, 1]} : vector<8x512xf32> to vector<8x384xf32>
    %c76 = arith.constant 76 : index
    %c0_19 = arith.constant 0 : index
    %31 = vector.load %arg8[%c76, %c0_19] : memref<108x384xf32, #tpu.memory_space<vmem>>, vector<8x384xf32>
    tpu.vector_store %arg8[%c76, %c0_19], %30 {strides = array<i32>} : memref<108x384xf32, #tpu.memory_space<vmem>>, vector<8x384xf32>,
    %32 = vector.extract_strided_slice %1 {offsets = [0, 49], sizes = [4, 384], strides = [1, 1]} : vector<4x512xf32> to vector<4x384xf32>
    %c84 = arith.constant 84 : index
    %c0_20 = arith.constant 0 : index
    %33 = vector.load %arg8[%c84, %c0_20] : memref<108x384xf32, #tpu.memory_space<vmem>>, vector<4x384xf32>
    tpu.vector_store %arg8[%c84, %c0_20], %32 {strides = array<i32>} : memref<108x384xf32, #tpu.memory_space<vmem>>, vector<4x384xf32>,
    %34 = vector.extract_strided_slice %3 {offsets = [0, 49], sizes = [8, 384], strides = [1, 1]} : vector<8x512xf32> to vector<8x384xf32>
    %c88 = arith.constant 88 : index
    %c0_21 = arith.constant 0 : index
    %35 = vector.load %arg8[%c88, %c0_21] : memref<108x384xf32, #tpu.memory_space<vmem>>, vector<8x384xf32>
    tpu.vector_store %arg8[%c88, %c0_21], %34 {strides = array<i32>} : memref<108x384xf32, #tpu.memory_space<vmem>>, vector<8x384xf32>,
    %36 = vector.extract_strided_slice %1 {offsets = [0, 50], sizes = [4, 384], strides = [1, 1]} : vector<4x512xf32> to vector<4x384xf32>
    %c96 = arith.constant 96 : index
    %c0_22 = arith.constant 0 : index
    %37 = vector.load %arg8[%c96, %c0_22] : memref<108x384xf32, #tpu.memory_space<vmem>>, vector<4x384xf32>
    tpu.vector_store %arg8[%c96, %c0_22], %36 {strides = array<i32>} : memref<108x384xf32, #tpu.memory_space<vmem>>, vector<4x384xf32>,
    %38 = vector.extract_strided_slice %3 {offsets = [0, 50], sizes = [8, 384], strides = [1, 1]} : vector<8x512xf32> to vector<8x384xf32>
    %c100 = arith.constant 100 : index
    %c0_23 = arith.constant 0 : index
    %39 = vector.load %arg8[%c100, %c0_23] : memref<108x384xf32, #tpu.memory_space<vmem>>, vector<8x384xf32>
    tpu.vector_store %arg8[%c100, %c0_23], %38 {strides = array<i32>} : memref<108x384xf32, #tpu.memory_space<vmem>>, vector<8x384xf32>,
    %c0_24 = arith.constant 0 : index
    %c0_25 = arith.constant 0 : index
    %40 = vector.load %arg4[%c0_24, %c0_25] : memref<32x108xf32, #tpu.memory_space<vmem>>, vector<32x108xf32>
    %c0_26 = arith.constant 0 : index
    %c0_27 = arith.constant 0 : index
    %41 = vector.load %arg8[%c0_26, %c0_27] : memref<108x384xf32, #tpu.memory_space<vmem>>, vector<108x384xf32>
    %cst = arith.constant dense<0.000000e+00> : vector<32x384xf32>
    %42 = tpu.matmul %40, %41, %cst {dimension_numbers = #tpu.dot_dimension_numbers<[1], [0], [0], [1], [0, 0, 1, 1], [], []>} : vector<32x108xf32>, vector<108x384xf32>, vector<32x384xf32> -> vector<32x384xf32>
    %c0_28 = arith.constant 0 : index
    %c0_29 = arith.constant 0 : index
    %43 = vector.load %arg5[%c0_28, %c0_29] : memref<32x1xf32, #tpu.memory_space<vmem>>, vector<32x1xf32>
    %44 = vector.broadcast %43 : vector<32x1xf32> to vector<32x384xf32>
    %45 = arith.addf %42, %44 : vector<32x384xf32>
    %46 = vector.extract_strided_slice %45 {offsets = [0, 0], sizes = [8, 384], strides = [1, 1]} : vector<32x384xf32> to vector<8x384xf32>
    %47 = arith.negf %46 : vector<8x384xf32>
    %48 = math.exp %47 : vector<8x384xf32>
    %cst_30 = arith.constant 1.000000e+00 : f32
    %49 = vector.broadcast %cst_30 : f32 to vector<8x384xf32>
    %50 = arith.addf %49, %48 : vector<8x384xf32>
    %51 = arith.divf %49, %50 : vector<8x384xf32>
    %52 = vector.extract_strided_slice %45 {offsets = [8, 0], sizes = [8, 384], strides = [1, 1]} : vector<32x384xf32> to vector<8x384xf32>
    %53 = arith.negf %52 : vector<8x384xf32>
    %54 = math.exp %53 : vector<8x384xf32>
    %cst_31 = arith.constant 1.000000e+00 : f32
    %55 = vector.broadcast %cst_31 : f32 to vector<8x384xf32>
    %56 = arith.addf %55, %54 : vector<8x384xf32>
    %57 = arith.divf %55, %56 : vector<8x384xf32>
    %58 = vector.extract_strided_slice %45 {offsets = [16, 0], sizes = [8, 384], strides = [1, 1]} : vector<32x384xf32> to vector<8x384xf32>
    %59 = arith.negf %58 : vector<8x384xf32>
    %60 = math.exp %59 : vector<8x384xf32>
    %cst_32 = arith.constant 1.000000e+00 : f32
    %61 = vector.broadcast %cst_32 : f32 to vector<8x384xf32>
    %62 = arith.addf %61, %60 : vector<8x384xf32>
    %63 = arith.divf %61, %62 : vector<8x384xf32>
    %64 = vector.extract_strided_slice %45 {offsets = [24, 0], sizes = [8, 384], strides = [1, 1]} : vector<32x384xf32> to vector<8x384xf32>
    %65 = math.tanh %64 : vector<8x384xf32>
    %c0_33 = arith.constant 0 : index
    %c0_34 = arith.constant 0 : index
    %c0_35 = arith.constant 0 : index
    %66 = vector.load %arg3[%c0_33, %c0_34, %c0_35] : memref<1x8x384xf32, #tpu.memory_space<vmem>>, vector<1x8x384xf32>
    %67 = vector.shape_cast %66 : vector<1x8x384xf32> to vector<8x384xf32>
    %68 = arith.mulf %57, %67 : vector<8x384xf32>
    %69 = arith.mulf %51, %65 : vector<8x384xf32>
    %70 = arith.addf %68, %69 : vector<8x384xf32>
    %71 = math.tanh %70 : vector<8x384xf32>
    %72 = arith.mulf %63, %71 : vector<8x384xf32>
    %c0_36 = arith.constant 0 : index
    %c0_37 = arith.constant 0 : index
    %c0_38 = arith.constant 0 : index
    %73 = vector.load %arg7[%c0_36, %c0_37, %c0_38] : memref<1x8x384xf32, #tpu.memory_space<vmem>>, vector<1x8x384xf32>
    %74 = vector.shape_cast %73 : vector<1x8x384xf32> to vector<8x384xf32>
    %75 = vector.shape_cast %70 : vector<8x384xf32> to vector<1x8x384xf32>
    tpu.vector_store %arg7[%c0_36, %c0_37, %c0_38], %75 {strides = array<i32>} : memref<1x8x384xf32, #tpu.memory_space<vmem>>, vector<1x8x384xf32>,
    %c0_39 = arith.constant 0 : index
    %c0_40 = arith.constant 0 : index
    %c0_41 = arith.constant 0 : index
    %76 = vector.load %arg6[%c0_39, %c0_40, %c0_41] : memref<1x8x384xf32, #tpu.memory_space<vmem>>, vector<1x8x384xf32>
    %77 = vector.shape_cast %76 : vector<1x8x384xf32> to vector<8x384xf32>
    %78 = vector.shape_cast %72 : vector<8x384xf32> to vector<1x8x384xf32>
    tpu.vector_store %arg6[%c0_39, %c0_40, %c0_41], %78 {strides = array<i32>} : memref<1x8x384xf32, #tpu.memory_space<vmem>>, vector<1x8x384xf32>,
    return
  }
  func.func @transform_0(%arg0: i32) -> (i32, i32, i32) {
    %c0_i32 = arith.constant 0 : i32
    %c0_i32_0 = arith.constant 0 : i32
    %c0_i32_1 = arith.constant 0 : i32
    return %arg0, %c0_i32, %c0_i32_0 : i32, i32, i32
  }
  func.func @transform_1(%arg0: i32) -> (i32, i32, i32) {
    %c0_i32 = arith.constant 0 : i32
    %c0_i32_0 = arith.constant 0 : i32
    %c0_i32_1 = arith.constant 0 : i32
    return %arg0, %c0_i32, %c0_i32_0 : i32, i32, i32
  }
  func.func @transform_2(%arg0: i32) -> (i32, i32, i32) {
    %c0_i32 = arith.constant 0 : i32
    %c0_i32_0 = arith.constant 0 : i32
    %c0_i32_1 = arith.constant 0 : i32
    return %arg0, %c0_i32, %c0_i32_0 : i32, i32, i32
  }
  func.func @transform_3(%arg0: i32) -> (i32, i32) {
    %c0_i32 = arith.constant 0 : i32
    %c0_i32_0 = arith.constant 0 : i32
    %c0_i32_1 = arith.constant 0 : i32
    return %c0_i32, %c0_i32_0 : i32, i32
  }
  func.func @transform_4(%arg0: i32) -> (i32, i32) {
    %c0_i32 = arith.constant 0 : i32
    %c0_i32_0 = arith.constant 0 : i32
    %c0_i32_1 = arith.constant 0 : i32
    return %c0_i32, %c0_i32_0 : i32, i32
  }
  func.func @transform_5(%arg0: i32) -> (i32, i32, i32) {
    %c0_i32 = arith.constant 0 : i32
    %c0_i32_0 = arith.constant 0 : i32
    %c0_i32_1 = arith.constant 0 : i32
    return %arg0, %c0_i32, %c0_i32_0 : i32, i32, i32
  }
  func.func @transform_6(%arg0: i32) -> (i32, i32, i32) {
    %c0_i32 = arith.constant 0 : i32
    %c0_i32_0 = arith.constant 0 : i32
    %c0_i32_1 = arith.constant 0 : i32
    return %arg0, %c0_i32, %c0_i32_0 : i32, i32, i32
  }
}

</mosaic_0001>

<llo_original>
// kernel: tpu_custom_call.1
$region0: #{tpu_custom_call.1}
  #allocation0 [shape = 'u32[]', space=smem, size = 0x4, offset = 0x4, fixed_abs, tag = 'smem constant byte address 0x4 - core index']
  #allocation1 [shape = 'u32[144,128]{1,0:T(1,128)}', space=vmem, size = 0x12000, scoped, tag = 'internal scratch']
  #allocation2 [shape = 'f32[108,384]{1,0:T(8,128)}', space=vmem, size = 0x2a000, scoped, tag = 'scratch operand']
  %s0 = inlined_call_operand.vmem [shape: f32[2,4,512], index: 0, kind: input, shape index: {}]
  %s1 = inlined_call_operand.vmem [shape: f32[2,8,512], index: 1, kind: input, shape index: {}]
  %s2 = inlined_call_operand.hbm [shape: f32[2,8,384], index: 2, kind: input, shape index: {}, may-alias: {2,6}]
  %s3 = inlined_call_operand.vmem [shape: f32[32,108], index: 3, kind: input, shape index: {}]
  %s4 = inlined_call_operand.vmem [shape: f32[32,1], index: 4, kind: input, shape index: {}]
  %s5 = inlined_call_operand.hbm [shape: f32[2,8,384], index: 5, kind: output, shape index: {0}]
  %s6 = inlined_call_operand.hbm [shape: f32[2,8,384], index: 6, kind: output, shape index: {1}, may-alias: {2,6}]
  %7 = xla_tuple %s5, %s6
  %s8 = sld [smem:[#allocation0]]
  $region65: #{tpu_custom_call.1} parent=0
    _
  %s10 = ssub.s32 1, %s8
  %s11 = scalar_select 0, %s10, %s8
  $region1: #{tpu_custom_call.1} parent=0
    #allocation3 [shape = 'u8[24576]{0}', space=vmem, size = 0x6000, scoped, tag = 'input window, operand 2']
    #allocation4 [shape = 's32[2]{0}', space=sflag, size = 0x8, scoped, tag = 'scoped memory for tpu_custom_call.1']
    #allocation5 [shape = 's32[2]{0}', space=sflag, size = 0x8, scoped, tag = 'scoped memory for tpu_custom_call.1']
    #allocation6 [shape = 'u8[24576]{0}', space=vmem, size = 0x6000, scoped, tag = 'output window, operand 0']
    #allocation7 [shape = 'u8[24576]{0}', space=vmem, size = 0x6000, scoped, tag = 'output window, operand 1']
    #allocation8 [shape = 's32[2]{0}', space=sflag, size = 0x8, scoped, tag = 'scoped memory for tpu_custom_call.1']
    %12 = vsyncpa [#allocation4], 0
    %s13 = scalar_lea.sflag [#allocation4], 1
    %14 = vsyncpa %s13, 0
    %15 = vsyncpa [#allocation5], 0
    %s16 = scalar_lea.sflag [#allocation5], 1
    %17 = vsyncpa %s16, 0
    %18 = vsyncpa [#allocation8], 0
    %s19 = scalar_lea.sflag [#allocation8], 1
    %20 = vsyncpa %s19, 0
    loop: start=0, step=1, limit=4
    $region2: #{tpu_custom_call.1} parent=1 // loop_pre_header
      _
    $region3: #{tpu_custom_call.1} parent=1 // loop_header
      %s22 = sphi 0, %s26
      %p23 = scmp.ge.s32.totalorder %s22, 4
      %s32 = sphi 0, %s34
      %s35 = sphi 0, %s32
      %s36 = sphi 0, %s35
      %s52 = sphi 0, %s36
      %s58 = sphi 0, %s60
      %s61 = sphi 0, %s58
      %s62 = sphi 0, %s61
      %s78 = sphi 0, %s62
      %s84 = sphi 0, %s86
      %s87 = sphi 0, %s84
      %s88 = sphi 0, %s87
      %s104 = sphi 0, %s88
      %s108 = sphi 0, %s108
      %s110 = sphi 0, %s108
      %s111 = sphi 0, %s110
      %s125 = sphi 0, %s111
      %s129 = sphi 0, %s129
      %s131 = sphi 0, %s129
      %s132 = sphi 0, %s131
      %s146 = sphi 0, %s132
      %s152 = sphi 0, %s154
      %s155 = sphi 0, %s152
      %s156 = sphi 0, %s155
      %s172 = sphi 0, %s156
      %s178 = sphi 0, %s180
      %s181 = sphi 0, %s178
      %s182 = sphi 0, %s181
      %s198 = sphi 0, %s182
    $region4: #{tpu_custom_call.1} parent=1 // loop_header_branch
      %25 = sbr.rel (%p23) target = $region8
    $region5: #{tpu_custom_call.1} parent=1 // loop_body
      %s27 = ssub.s32 %s22, 1
      %s28 = ssub.s32 %s22, 2
      %s29 = sadd.s32 %s22, 1
      %s30 = ssub.s32 %s22, %s29
      %p31 = scmp.eq.s32.totalorder %s30, 0
      %s33 = sadd.s32 %s32, 1
      %s34 = scalar_select %p31, %s32, %s33
      %p37 = pneg %p31
      %p38 = scmp.eq.s32.totalorder %s22, 1
      %p39 = por %p37, %p38
      %p40 = scmp.ne.s32.totalorder %s32, %s35
      %p41 = scmp.eq.s32.totalorder %s22, 0
      %p42 = por %p40, %p41
      %p43 = scmp.ne.s32.totalorder %s32, %s35
      %p44 = scmp.eq.s32.totalorder %s27, 1
      %p45 = por %p43, %p44
      %p46 = scmp.ne.s32.totalorder %s35, %s36
      %p47 = scmp.eq.s32.totalorder %s27, 0
      %p48 = por %p46, %p47
      %p49 = scmp.ne.s32.totalorder %s35, %s36
      %p50 = scmp.eq.s32.totalorder %s28, 1
      %p51 = por %p49, %p50
      %p53 = scmp.ne.s32.totalorder %s36, %s52
      %p54 = scmp.eq.s32.totalorder %s28, 0
      %p55 = por %p53, %p54
      %s56 = ssub.s32 %s22, %s29
      %p57 = scmp.eq.s32.totalorder %s56, 0
      %s59 = sadd.s32 %s58, 1
      %s60 = scalar_select %p57, %s58, %s59
      %p63 = pneg %p57
      %p64 = scmp.eq.s32.totalorder %s22, 1
      %p65 = por %p63, %p64
      %p66 = scmp.ne.s32.totalorder %s58, %s61
      %p67 = scmp.eq.s32.totalorder %s22, 0
      %p68 = por %p66, %p67
      %p69 = scmp.ne.s32.totalorder %s58, %s61
      %p70 = scmp.eq.s32.totalorder %s27, 1
      %p71 = por %p69, %p70
      %p72 = scmp.ne.s32.totalorder %s61, %s62
      %p73 = scmp.eq.s32.totalorder %s27, 0
      %p74 = por %p72, %p73
      %p75 = scmp.ne.s32.totalorder %s61, %s62
      %p76 = scmp.eq.s32.totalorder %s28, 1
      %p77 = por %p75, %p76
      %p79 = scmp.ne.s32.totalorder %s62, %s78
      %p80 = scmp.eq.s32.totalorder %s28, 0
      %p81 = por %p79, %p80
      %s82 = ssub.s32 %s22, %s29
      %p83 = scmp.eq.s32.totalorder %s82, 0
      %s85 = sadd.s32 %s84, 1
      %s86 = scalar_select %p83, %s84, %s85
      %p89 = pneg %p83
      %p90 = scmp.eq.s32.totalorder %s22, 1
      %p91 = por %p89, %p90
      %p92 = scmp.ne.s32.totalorder %s84, %s87
      %p93 = scmp.eq.s32.totalorder %s22, 0
      %p94 = por %p92, %p93
      %p95 = scmp.ne.s32.totalorder %s84, %s87
      %p96 = scmp.eq.s32.totalorder %s27, 1
      %p97 = por %p95, %p96
      %p98 = scmp.ne.s32.totalorder %s87, %s88
      %p99 = scmp.eq.s32.totalorder %s27, 0
      %p100 = por %p98, %p99
      %p101 = scmp.ne.s32.totalorder %s87, %s88
      %p102 = scmp.eq.s32.totalorder %s28, 1
      %p103 = por %p101, %p102
      %p105 = scmp.ne.s32.totalorder %s88, %s104
      %p106 = scmp.eq.s32.totalorder %s28, 0
      %p107 = por %p105, %p106
      %s109 = sadd.s32 %s108, 1
      %p112 = scmp.eq.s32.totalorder %s22, 1
      %p113 = scmp.ne.s32.totalorder %s108, %s110
      %p114 = scmp.eq.s32.totalorder %s22, 0
      %p115 = por %p113, %p114
      %p116 = scmp.ne.s32.totalorder %s108, %s110
      %p117 = scmp.eq.s32.totalorder %s27, 1
      %p118 = por %p116, %p117
      %p119 = scmp.ne.s32.totalorder %s110, %s111
      %p120 = scmp.eq.s32.totalorder %s27, 0
      %p121 = por %p119, %p120
      %p122 = scmp.ne.s32.totalorder %s110, %s111
      %p123 = scmp.eq.s32.totalorder %s28, 1
      %p124 = por %p122, %p123
      %p126 = scmp.ne.s32.totalorder %s111, %s125
      %p127 = scmp.eq.s32.totalorder %s28, 0
      %p128 = por %p126, %p127
      %s130 = sadd.s32 %s129, 1
      %p133 = scmp.eq.s32.totalorder %s22, 1
      %p134 = scmp.ne.s32.totalorder %s129, %s131
      %p135 = scmp.eq.s32.totalorder %s22, 0
      %p136 = por %p134, %p135
      %p137 = scmp.ne.s32.totalorder %s129, %s131
      %p138 = scmp.eq.s32.totalorder %s27, 1
      %p139 = por %p137, %p138
      %p140 = scmp.ne.s32.totalorder %s131, %s132
      %p141 = scmp.eq.s32.totalorder %s27, 0
      %p142 = por %p140, %p141
      %p143 = scmp.ne.s32.totalorder %s131, %s132
      %p144 = scmp.eq.s32.totalorder %s28, 1
      %p145 = por %p143, %p144
      %p147 = scmp.ne.s32.totalorder %s132, %s146
      %p148 = scmp.eq.s32.totalorder %s28, 0
      %p149 = por %p147, %p148
      %s150 = ssub.s32 %s22, %s29
      %p151 = scmp.eq.s32.totalorder %s150, 0
      %s153 = sadd.s32 %s152, 1
      %s154 = scalar_select %p151, %s152, %s153
      %p157 = pneg %p151
      %p158 = scmp.eq.s32.totalorder %s22, 1
      %p159 = por %p157, %p158
      %p160 = scmp.ne.s32.totalorder %s152, %s155
      %p161 = scmp.eq.s32.totalorder %s22, 0
      %p162 = por %p160, %p161
      %p163 = scmp.ne.s32.totalorder %s152, %s155
      %p164 = scmp.eq.s32.totalorder %s27, 1
      %p165 = por %p163, %p164
      %p166 = scmp.ne.s32.totalorder %s155, %s156
      %p167 = scmp.eq.s32.totalorder %s27, 0
      %p168 = por %p166, %p167
      %p169 = scmp.ne.s32.totalorder %s155, %s156
      %p170 = scmp.eq.s32.totalorder %s28, 1
      %p171 = por %p169, %p170
      %p173 = scmp.ne.s32.totalorder %s156, %s172
      %p174 = scmp.eq.s32.totalorder %s28, 0
      %p175 = por %p173, %p174
      %s176 = ssub.s32 %s22, %s29
      %p177 = scmp.eq.s32.totalorder %s176, 0
      %s179 = sadd.s32 %s178, 1
      %s180 = scalar_select %p177, %s178, %s179
      %p183 = pneg %p177
      %p184 = scmp.eq.s32.totalorder %s22, 1
      %p185 = por %p183, %p184
      %p186 = scmp.ne.s32.totalorder %s178, %s181
      %p187 = scmp.eq.s32.totalorder %s22, 0
      %p188 = por %p186, %p187
      %p189 = scmp.ne.s32.totalorder %s178, %s181
      %p190 = scmp.eq.s32.totalorder %s27, 1
      %p191 = por %p189, %p190
      %p192 = scmp.ne.s32.totalorder %s181, %s182
      %p193 = scmp.eq.s32.totalorder %s27, 0
      %p194 = por %p192, %p193
      %p195 = scmp.ne.s32.totalorder %s181, %s182
      %p196 = scmp.eq.s32.totalorder %s28, 1
      %p197 = por %p195, %p196
      %p199 = scmp.ne.s32.totalorder %s182, %s198
      %p200 = scmp.eq.s32.totalorder %s28, 0
      %p201 = por %p199, %p200
      %p202 = scmp.le.s32.totalorder 1, %s22
      %p203 = scmp.lt.s32.totalorder %s22, 3
      %p204 = pnand %p202, %p203
      %p205 = pneg %p204
      // Predicated region
      $region9: #{tpu_custom_call.1} parent=5 // pred_check
        _
      $region10: #{tpu_custom_call.1} parent=5 // pred_check_branch
        %207 = sbr.rel (%p204) target = $region12
      $region11: #{tpu_custom_call.1} parent=5 // pred_region
        %s208 = ssub.s32 %s22, 1
        // Predicated region
        $region13: #{tpu_custom_call.1} parent=11 // pred_check
          %p209 = pneg %p121
        $region14: #{tpu_custom_call.1} parent=11 // pred_check_branch
          %211 = sbr.rel (%p209) target = $region16
        $region15: #{tpu_custom_call.1} parent=11 // pred_region
          _
        $region16: #{tpu_custom_call.1} parent=11 // pred_fallthru
          _
        // Predicated region
        $region17: #{tpu_custom_call.1} parent=11 // pred_check
          %p212 = pneg %p142
        $region18: #{tpu_custom_call.1} parent=11 // pred_check_branch
          %214 = sbr.rel (%p212) target = $region20
        $region19: #{tpu_custom_call.1} parent=11 // pred_region
          _
        $region20: #{tpu_custom_call.1} parent=11 // pred_fallthru
          _
      $region12: #{tpu_custom_call.1} parent=5 // pred_fallthru
        _
      %p215 = scmp.lt.s32.totalorder %s22, 2
      // Predicated region
      $region21: #{tpu_custom_call.1} parent=5 // pred_check
        %p216 = pneg %p215
      $region22: #{tpu_custom_call.1} parent=5 // pred_check_branch
        %218 = sbr.rel (%p216) target = $region24
      $region23: #{tpu_custom_call.1} parent=5 // pred_region
        // Predicated region
        $region25: #{tpu_custom_call.1} parent=23 // pred_check
          %p219 = pneg %p42
        $region26: #{tpu_custom_call.1} parent=23 // pred_check_branch
          %221 = sbr.rel (%p219) target = $region28
        $region27: #{tpu_custom_call.1} parent=23 // pred_region
          %p222 = scmp.lt.s32.totalorder %s22, 1
          %s223 = scalar_select %p222, %s22, 1
          %s224 = smul.addr %s223, 4
          %s225 = smul.addr %s224, 4
          %s226 = scalar_lea.vmem %s0, %s225
        $region28: #{tpu_custom_call.1} parent=23 // pred_fallthru
          _
        // Predicated region
        $region29: #{tpu_custom_call.1} parent=23 // pred_check
          %p227 = pneg %p68
        $region30: #{tpu_custom_call.1} parent=23 // pred_check_branch
          %229 = sbr.rel (%p227) target = $region32
        $region31: #{tpu_custom_call.1} parent=23 // pred_region
          %p230 = scmp.lt.s32.totalorder %s22, 1
          %s231 = scalar_select %p230, %s22, 1
          %s232 = smul.addr %s231, 4
          %s233 = smul.addr %s232, 8
          %s234 = scalar_lea.vmem %s1, %s233
        $region32: #{tpu_custom_call.1} parent=23 // pred_fallthru
          _
        // Predicated region
        $region33: #{tpu_custom_call.1} parent=23 // pred_check
          %p235 = pneg %p94
        $region34: #{tpu_custom_call.1} parent=23 // pred_check_branch
          %237 = sbr.rel (%p235) target = $region36
        $region35: #{tpu_custom_call.1} parent=23 // pred_region
          %s238 = sand.u32 %s84, 1
          %s239 = scalar_lea.sflag [#allocation4], %s238
          %s240 = sand.u32 %s84, 1
          %s241 = smul.addr %s240, 24
          %s242 = scalar_lea.vmem [#allocation3], %s241
          %s244 = ssub.s32 384, 384
          %245 = vsyncadd %s239, %s244
          %s246 = smul.addr %s22, 3
          %s247 = smul.addr %s246, 128
          %s248 = scalar_lea.hbm %s2, %s247
          %s250 = sshll.u32 %s242, 4
          %s251 = int_to_ptr.vmem [resolvable:$true] %s250
          %253 = dma.hbm_to_vmem [thread:$0]  %s248, 384, %s251, %s239
        $region36: #{tpu_custom_call.1} parent=23 // pred_fallthru
          _
      $region24: #{tpu_custom_call.1} parent=5 // pred_fallthru
        _
      %p254 = scmp.le.s32.totalorder 1, %s22
      %p255 = scmp.lt.s32.totalorder %s22, 3
      %p256 = pnand %p254, %p255
      %p257 = pneg %p256
      // Predicated region
      $region37: #{tpu_custom_call.1} parent=5 // pred_check
        _
      $region38: #{tpu_custom_call.1} parent=5 // pred_check_branch
        %259 = sbr.rel (%p256) target = $region40
      $region39: #{tpu_custom_call.1} parent=5 // pred_region
        %s260 = ssub.s32 %s22, 1
        %s261 = sand.u32 %s87, 1
        %s262 = scalar_lea.sflag [#allocation4], %s261
        %s263 = sand.u32 %s87, 1
        %s264 = smul.addr %s263, 24
        %s265 = scalar_lea.vmem [#allocation3], %s264
        // Predicated region
        $region41: #{tpu_custom_call.1} parent=39 // pred_check
          %p266 = pneg %p100
        $region42: #{tpu_custom_call.1} parent=39 // pred_check_branch
          %268 = sbr.rel (%p266) target = $region44
        $region43: #{tpu_custom_call.1} parent=39 // pred_region
          %269 = dma.done %s262, 384
        $region44: #{tpu_custom_call.1} parent=39 // pred_fallthru
          _
        %p270 = scmp.lt.s32.totalorder %s27, 1
        %s271 = scalar_select %p270, %s27, 1
        %s272 = smul.addr %s271, 4
        %s273 = smul.addr %s272, 4
        %s274 = scalar_lea.vmem %s0, %s273
        %p275 = pneg %p48
        %p276 = pneg %p45
        %p277 = scmp.lt.s32.totalorder %s27, 1
        %s278 = scalar_select %p277, %s27, 1
        %s279 = smul.addr %s278, 4
        %s280 = smul.addr %s279, 8
        %s281 = scalar_lea.vmem %s1, %s280
        %p282 = pneg %p74
        %p283 = pneg %p71
        %s284 = sand.u32 %s87, 1
        %s285 = scalar_lea.sflag [#allocation4], %s284
        %s286 = sand.u32 %s87, 1
        %s287 = smul.addr %s286, 24
        %s288 = scalar_lea.vmem [#allocation3], %s287
        %p289 = pneg %p100
        %p290 = pneg %p97
        %p291 = pneg %p121
        %p292 = pneg %p118
        %p293 = pneg %p142
        %p294 = pneg %p139
        %p295 = pneg %p168
        %p296 = pneg %p165
        %s297 = sand.u32 %s155, 1
        %s298 = scalar_lea.sflag [#allocation5], %s297
        %s299 = sand.u32 %s155, 1
        %s300 = smul.addr %s299, 24
        %s301 = scalar_lea.vmem [#allocation6], %s300
        %p302 = pneg %p194
        %p303 = pneg %p191
        %s304 = sand.u32 %s181, 1
        %s305 = scalar_lea.sflag [#allocation8], %s304
        %s306 = sand.u32 %s181, 1
        %s307 = smul.addr %s306, 24
        %s308 = scalar_lea.vmem [#allocation7], %s307
        %p309 = scmp.lt.s32.totalorder %s27, 1
        %s310 = scalar_select %p309, %s27, 1
        %s311 = smul.addr %s310, 4
        %s312 = smul.addr %s311, 4
        %s313 = scalar_lea.vmem %s0, %s312
        %p314 = scmp.lt.s32.totalorder %s27, 1
        %s315 = scalar_select %p314, %s27, 1
        %s316 = smul.addr %s315, 4
        %s317 = smul.addr %s316, 8
        %s318 = scalar_lea.vmem %s1, %s317
        %v319 = vld [vmem:[%s313] sm:$0xff]
        %v320 = vld [vmem:[%s313 + $0x8] sm:$0xff]
        %v321 = vld [vmem:[%s318] sm:$0xff]
        %v322 = vld [vmem:[%s318 + $0x8] sm:$0xff]
        %v323 = vld [vmem:[%s318 + $0x10] sm:$0xff]
        %v324 = vld [vmem:[%s318 + $0x18] sm:$0xff]
        %v327 = vcombine.high %v319, %v319
        %329 = vst [vmem:[#allocation2] sm:$0xf] %v319
        %330 = vst [vmem:[#allocation2 + $0x8] sm:$0xf] %v327
        %331 = vst [vmem:[#allocation2 + $0x10] sm:$0xf] %v320
        %v335 = vrot.slane %v321, 4
        %v336 = vrot.slane %v322, 4
        %v337 = vrot.slane %v323, 4
        %341 = vst [vmem:[#allocation2] sm:$0xf0] %v335
        %342 = vst [vmem:[#allocation2 + $0x8] sm:$0xf0] %v336
        %343 = vst [vmem:[#allocation2 + $0x10] sm:$0xf0] %v337
        %344 = vst [vmem:[#allocation2 + $0x18] sm:$0xf] %v335
        %345 = vst [vmem:[#allocation2 + $0x20] sm:$0xf] %v336
        %346 = vst [vmem:[#allocation2 + $0x28] sm:$0xf] %v337
        %v347 = vcombine.low %v319, %v319
        %v348 = vcombine.low %v320, %v320
        %349 = vrot.lane.b32.xlu0 %v347, 127
        %v350 = vpop.permute.xlu0 %349
        %351 = vrot.lane.b32.xlu0 %v319, 127
        %v352 = vpop.permute.xlu0 %351
        %353 = vrot.lane.b32.xlu0 %v348, 127
        %v354 = vpop.permute.xlu0 %353
        %355 = vrot.lane.b32.xlu0 %v320, 127
        %v356 = vpop.permute.xlu0 %355
        %vm357 = vcmask 1039360
        %v358 = vsel %vm357, %v350, %v352
        %v359 = vsel %vm357, %v352, %v354
        %v360 = vsel %vm357, %v354, %v356
        %364 = vst [vmem:[#allocation2 + $0x18] sm:$0xf0] %v358
        %365 = vst [vmem:[#allocation2 + $0x20] sm:$0xf0] %v359
        %366 = vst [vmem:[#allocation2 + $0x28] sm:$0xf0] %v360
        %368 = vrot.lane.b32.xlu0 %v321, 127
        %v369 = vpop.permute.xlu0 %368
        %370 = vrot.lane.b32.xlu0 %v322, 127
        %v371 = vpop.permute.xlu0 %370
        %372 = vrot.lane.b32.xlu0 %v323, 127
        %v373 = vpop.permute.xlu0 %372
        %374 = vrot.lane.b32.xlu0 %v324, 127
        %v375 = vpop.permute.xlu0 %374
        %v376 = vsel %vm357, %v369, %v371
        %v377 = vsel %vm357, %v371, %v373
        %v378 = vsel %vm357, %v373, %v375
        %382 = vst [vmem:[#allocation2 + $0x30] sm:$0xff] %v376
        %383 = vst [vmem:[#allocation2 + $0x38] sm:$0xff] %v377
        %384 = vst [vmem:[#allocation2 + $0x40] sm:$0xff] %v378
        %v385 = vcombine.high %v320, %v320
        %386 = vrot.lane.b32.xlu0 %v319, 126
        %v387 = vpop.permute.xlu0 %386
        %388 = vrot.lane.b32.xlu0 %v327, 126
        %v389 = vpop.permute.xlu0 %388
        %390 = vrot.lane.b32.xlu0 %v320, 126
        %v391 = vpop.permute.xlu0 %390
        %392 = vrot.lane.b32.xlu0 %v385, 126
        %v393 = vpop.permute.xlu0 %392
        %vm394 = vcmask 1031168
        %v395 = vsel %vm394, %v387, %v389
        %v396 = vsel %vm394, %v389, %v391
        %v397 = vsel %vm394, %v391, %v393
        %401 = vst [vmem:[#allocation2 + $0x48] sm:$0xf] %v395
        %402 = vst [vmem:[#allocation2 + $0x50] sm:$0xf] %v396
        %403 = vst [vmem:[#allocation2 + $0x58] sm:$0xf] %v397
        %v404 = vrot.slane %v324, 4
        %405 = vrot.lane.b32.xlu0 %v335, 126
        %v406 = vpop.permute.xlu0 %405
        %407 = vrot.lane.b32.xlu0 %v336, 126
        %v408 = vpop.permute.xlu0 %407
        %409 = vrot.lane.b32.xlu0 %v337, 126
        %v410 = vpop.permute.xlu0 %409
        %411 = vrot.lane.b32.xlu0 %v404, 126
        %v412 = vpop.permute.xlu0 %411
        %v413 = vsel %vm394, %v406, %v408
        %v414 = vsel %vm394, %v408, %v410
        %v415 = vsel %vm394, %v410, %v412
        %419 = vst [vmem:[#allocation2 + $0x48] sm:$0xf0] %v413
        %420 = vst [vmem:[#allocation2 + $0x50] sm:$0xf0] %v414
        %421 = vst [vmem:[#allocation2 + $0x58] sm:$0xf0] %v415
        %422 = vst [vmem:[#allocation2 + $0x60] sm:$0xf] %v413
        %423 = vst [vmem:[#allocation2 + $0x68] sm:$0xf] %v414
        %424 = vst [vmem:[#allocation2 + $0x70] sm:$0xf] %v415
        %425 = vrot.lane.b32.xlu0 %v347, 104
        %v426 = vpop.permute.xlu0 %425
        %427 = vrot.lane.b32.xlu0 %v319, 104
        %v428 = vpop.permute.xlu0 %427
        %429 = vrot.lane.b32.xlu0 %v348, 104
        %v430 = vpop.permute.xlu0 %429
        %431 = vrot.lane.b32.xlu0 %v320, 104
        %v432 = vpop.permute.xlu0 %431
        %vm433 = vcmask 850944
        %v434 = vsel %vm433, %v426, %v428
        %v435 = vsel %vm433, %v428, %v430
        %v436 = vsel %vm433, %v430, %v432
        %440 = vst [vmem:[#allocation2 + $0x60] sm:$0xf0] %v434
        %441 = vst [vmem:[#allocation2 + $0x68] sm:$0xf0] %v435
        %442 = vst [vmem:[#allocation2 + $0x70] sm:$0xf0] %v436
        %443 = vrot.lane.b32.xlu0 %v321, 104
        %v444 = vpop.permute.xlu0 %443
        %445 = vrot.lane.b32.xlu0 %v322, 104
        %v446 = vpop.permute.xlu0 %445
        %447 = vrot.lane.b32.xlu0 %v323, 104
        %v448 = vpop.permute.xlu0 %447
        %449 = vrot.lane.b32.xlu0 %v324, 104
        %v450 = vpop.permute.xlu0 %449
        %v451 = vsel %vm433, %v444, %v446
        %v452 = vsel %vm433, %v446, %v448
        %v453 = vsel %vm433, %v448, %v450
        %457 = vst [vmem:[#allocation2 + $0x78] sm:$0xff] %v451
        %458 = vst [vmem:[#allocation2 + $0x80] sm:$0xff] %v452
        %459 = vst [vmem:[#allocation2 + $0x88] sm:$0xff] %v453
        %460 = vrot.lane.b32.xlu0 %v319, 103
        %v461 = vpop.permute.xlu0 %460
        %462 = vrot.lane.b32.xlu0 %v327, 103
        %v463 = vpop.permute.xlu0 %462
        %464 = vrot.lane.b32.xlu0 %v320, 103
        %v465 = vpop.permute.xlu0 %464
        %466 = vrot.lane.b32.xlu0 %v385, 103
        %v467 = vpop.permute.xlu0 %466
        %vm468 = vcmask 842752
        %v469 = vsel %vm468, %v461, %v463
        %v470 = vsel %vm468, %v463, %v465
        %v471 = vsel %vm468, %v465, %v467
        %475 = vst [vmem:[#allocation2 + $0x90] sm:$0xf] %v469
        %476 = vst [vmem:[#allocation2 + $0x98] sm:$0xf] %v470
        %477 = vst [vmem:[#allocation2 + $0xa0] sm:$0xf] %v471
        %478 = vrot.lane.b32.xlu0 %v335, 103
        %v479 = vpop.permute.xlu0 %478
        %480 = vrot.lane.b32.xlu0 %v336, 103
        %v481 = vpop.permute.xlu0 %480
        %482 = vrot.lane.b32.xlu0 %v337, 103
        %v483 = vpop.permute.xlu0 %482
        %484 = vrot.lane.b32.xlu0 %v404, 103
        %v485 = vpop.permute.xlu0 %484
        %v486 = vsel %vm468, %v479, %v481
        %v487 = vsel %vm468, %v481, %v483
        %v488 = vsel %vm468, %v483, %v485
        %492 = vst [vmem:[#allocation2 + $0x90] sm:$0xf0] %v486
        %493 = vst [vmem:[#allocation2 + $0x98] sm:$0xf0] %v487
        %494 = vst [vmem:[#allocation2 + $0xa0] sm:$0xf0] %v488
        %495 = vst [vmem:[#allocation2 + $0xa8] sm:$0xf] %v486
        %496 = vst [vmem:[#allocation2 + $0xb0] sm:$0xf] %v487
        %497 = vst [vmem:[#allocation2 + $0xb8] sm:$0xf] %v488
        %498 = vrot.lane.b32.xlu0 %v347, 102
        %v499 = vpop.permute.xlu0 %498
        %500 = vrot.lane.b32.xlu0 %v319, 102
        %v501 = vpop.permute.xlu0 %500
        %502 = vrot.lane.b32.xlu0 %v348, 102
        %v503 = vpop.permute.xlu0 %502
        %504 = vrot.lane.b32.xlu0 %v320, 102
        %v505 = vpop.permute.xlu0 %504
        %vm506 = vcmask 834560
        %v507 = vsel %vm506, %v499, %v501
        %v508 = vsel %vm506, %v501, %v503
        %v509 = vsel %vm506, %v503, %v505
        %513 = vst [vmem:[#allocation2 + $0xa8] sm:$0xf0] %v507
        %514 = vst [vmem:[#allocation2 + $0xb0] sm:$0xf0] %v508
        %515 = vst [vmem:[#allocation2 + $0xb8] sm:$0xf0] %v509
        %516 = vrot.lane.b32.xlu0 %v321, 102
        %v517 = vpop.permute.xlu0 %516
        %518 = vrot.lane.b32.xlu0 %v322, 102
        %v519 = vpop.permute.xlu0 %518
        %520 = vrot.lane.b32.xlu0 %v323, 102
        %v521 = vpop.permute.xlu0 %520
        %522 = vrot.lane.b32.xlu0 %v324, 102
        %v523 = vpop.permute.xlu0 %522
        %v524 = vsel %vm506, %v517, %v519
        %v525 = vsel %vm506, %v519, %v521
        %v526 = vsel %vm506, %v521, %v523
        %530 = vst [vmem:[#allocation2 + $0xc0] sm:$0xff] %v524
        %531 = vst [vmem:[#allocation2 + $0xc8] sm:$0xff] %v525
        %532 = vst [vmem:[#allocation2 + $0xd0] sm:$0xff] %v526
        %533 = vrot.lane.b32.xlu0 %v319, 80
        %v534 = vpop.permute.xlu0 %533
        %535 = vrot.lane.b32.xlu0 %v327, 80
        %v536 = vpop.permute.xlu0 %535
        %537 = vrot.lane.b32.xlu0 %v320, 80
        %v538 = vpop.permute.xlu0 %537
        %539 = vrot.lane.b32.xlu0 %v385, 80
        %v540 = vpop.permute.xlu0 %539
        %vm541 = vcmask 654336
        %v542 = vsel %vm541, %v534, %v536
        %v543 = vsel %vm541, %v536, %v538
        %v544 = vsel %vm541, %v538, %v540
        %548 = vst [vmem:[#allocation2 + $0xd8] sm:$0xf] %v542
        %549 = vst [vmem:[#allocation2 + $0xe0] sm:$0xf] %v543
        %550 = vst [vmem:[#allocation2 + $0xe8] sm:$0xf] %v544
        %551 = vrot.lane.b32.xlu0 %v335, 80
        %v552 = vpop.permute.xlu0 %551
        %553 = vrot.lane.b32.xlu0 %v336, 80
        %v554 = vpop.permute.xlu0 %553
        %555 = vrot.lane.b32.xlu0 %v337, 80
        %v556 = vpop.permute.xlu0 %555
        %557 = vrot.lane.b32.xlu0 %v404, 80
        %v558 = vpop.permute.xlu0 %557
        %v559 = vsel %vm541, %v552, %v554
        %v560 = vsel %vm541, %v554, %v556
        %v561 = vsel %vm541, %v556, %v558
        %565 = vst [vmem:[#allocation2 + $0xd8] sm:$0xf0] %v559
        %566 = vst [vmem:[#allocation2 + $0xe0] sm:$0xf0] %v560
        %567 = vst [vmem:[#allocation2 + $0xe8] sm:$0xf0] %v561
        %568 = vst [vmem:[#allocation2 + $0xf0] sm:$0xf] %v559
        %569 = vst [vmem:[#allocation2 + $0xf8] sm:$0xf] %v560
        %570 = vst [vmem:[#allocation2 + $0x100] sm:$0xf] %v561
        %571 = vrot.lane.b32.xlu0 %v347, 79
        %v572 = vpop.permute.xlu0 %571
        %573 = vrot.lane.b32.xlu0 %v319, 79
        %v574 = vpop.permute.xlu0 %573
        %575 = vrot.lane.b32.xlu0 %v348, 79
        %v576 = vpop.permute.xlu0 %575
        %577 = vrot.lane.b32.xlu0 %v320, 79
        %v578 = vpop.permute.xlu0 %577
        %vm579 = vcmask 646144
        %v580 = vsel %vm579, %v572, %v574
        %v581 = vsel %vm579, %v574, %v576
        %v582 = vsel %vm579, %v576, %v578
        %586 = vst [vmem:[#allocation2 + $0xf0] sm:$0xf0] %v580
        %587 = vst [vmem:[#allocation2 + $0xf8] sm:$0xf0] %v581
        %588 = vst [vmem:[#allocation2 + $0x100] sm:$0xf0] %v582
        %589 = vrot.lane.b32.xlu0 %v321, 79
        %v590 = vpop.permute.xlu0 %589
        %591 = vrot.lane.b32.xlu0 %v322, 79
        %v592 = vpop.permute.xlu0 %591
        %593 = vrot.lane.b32.xlu0 %v323, 79
        %v594 = vpop.permute.xlu0 %593
        %595 = vrot.lane.b32.xlu0 %v324, 79
        %v596 = vpop.permute.xlu0 %595
        %v597 = vsel %vm579, %v590, %v592
        %v598 = vsel %vm579, %v592, %v594
        %v599 = vsel %vm579, %v594, %v596
        %603 = vst [vmem:[#allocation2 + $0x108] sm:$0xff] %v597
        %604 = vst [vmem:[#allocation2 + $0x110] sm:$0xff] %v598
        %605 = vst [vmem:[#allocation2 + $0x118] sm:$0xff] %v599
        %606 = vrot.lane.b32.xlu0 %v319, 78
        %v607 = vpop.permute.xlu0 %606
        %608 = vrot.lane.b32.xlu0 %v327, 78
        %v609 = vpop.permute.xlu0 %608
        %610 = vrot.lane.b32.xlu0 %v320, 78
        %v611 = vpop.permute.xlu0 %610
        %612 = vrot.lane.b32.xlu0 %v385, 78
        %v613 = vpop.permute.xlu0 %612
        %vm614 = vcmask 637952
        %v615 = vsel %vm614, %v607, %v609
        %v616 = vsel %vm614, %v609, %v611
        %v617 = vsel %vm614, %v611, %v613
        %621 = vst [vmem:[#allocation2 + $0x120] sm:$0xf] %v615
        %622 = vst [vmem:[#allocation2 + $0x128] sm:$0xf] %v616
        %623 = vst [vmem:[#allocation2 + $0x130] sm:$0xf] %v617
        %624 = vrot.lane.b32.xlu0 %v335, 78
        %v625 = vpop.permute.xlu0 %624
        %626 = vrot.lane.b32.xlu0 %v336, 78
        %v627 = vpop.permute.xlu0 %626
        %628 = vrot.lane.b32.xlu0 %v337, 78
        %v629 = vpop.permute.xlu0 %628
        %630 = vrot.lane.b32.xlu0 %v404, 78
        %v631 = vpop.permute.xlu0 %630
        %v632 = vsel %vm614, %v625, %v627
        %v633 = vsel %vm614, %v627, %v629
        %v634 = vsel %vm614, %v629, %v631
        %638 = vst [vmem:[#allocation2 + $0x120] sm:$0xf0] %v632
        %639 = vst [vmem:[#allocation2 + $0x128] sm:$0xf0] %v633
        %640 = vst [vmem:[#allocation2 + $0x130] sm:$0xf0] %v634
        %641 = vst [vmem:[#allocation2 + $0x138] sm:$0xf] %v632
        %642 = vst [vmem:[#allocation2 + $0x140] sm:$0xf] %v633
        %643 = vst [vmem:[#allocation2 + $0x148] sm:$0xf] %v634
        %v644 = vld [vmem:[%s3] sm:$0xff]
        %v645 = vld [vmem:[%s3 + $0x8] sm:$0xff]
        %v646 = vld [vmem:[%s3 + $0x10] sm:$0xff]
        %v647 = vld [vmem:[%s3 + $0x18] sm:$0xff]
        %v648 = vld [vmem:[#allocation2] sm:$0xff]
        %v649 = vld [vmem:[#allocation2 + $0x8] sm:$0xff]
        %v650 = vld [vmem:[#allocation2 + $0x10] sm:$0xff]
        %v651 = vld [vmem:[#allocation2 + $0x18] sm:$0xff]
        %v652 = vld [vmem:[#allocation2 + $0x20] sm:$0xff]
        %v653 = vld [vmem:[#allocation2 + $0x28] sm:$0xff]
        %v654 = vld [vmem:[#allocation2 + $0x30] sm:$0xff]
        %v655 = vld [vmem:[#allocation2 + $0x38] sm:$0xff]
        %v656 = vld [vmem:[#allocation2 + $0x40] sm:$0xff]
        %v657 = vld [vmem:[#allocation2 + $0x48] sm:$0xff]
        %v658 = vld [vmem:[#allocation2 + $0x50] sm:$0xff]
        %v659 = vld [vmem:[#allocation2 + $0x58] sm:$0xff]
        %v660 = vld [vmem:[#allocation2 + $0x60] sm:$0xff]
        %v661 = vld [vmem:[#allocation2 + $0x68] sm:$0xff]
        %v662 = vld [vmem:[#allocation2 + $0x70] sm:$0xff]
        %v663 = vld [vmem:[#allocation2 + $0x78] sm:$0xff]
        %v664 = vld [vmem:[#allocation2 + $0x80] sm:$0xff]
        %v665 = vld [vmem:[#allocation2 + $0x88] sm:$0xff]
        %v666 = vld [vmem:[#allocation2 + $0x90] sm:$0xff]
        %v667 = vld [vmem:[#allocation2 + $0x98] sm:$0xff]
        %v668 = vld [vmem:[#allocation2 + $0xa0] sm:$0xff]
        %v669 = vld [vmem:[#allocation2 + $0xa8] sm:$0xff]
        %v670 = vld [vmem:[#allocation2 + $0xb0] sm:$0xff]
        %v671 = vld [vmem:[#allocation2 + $0xb8] sm:$0xff]
        %v672 = vld [vmem:[#allocation2 + $0xc0] sm:$0xff]
        %v673 = vld [vmem:[#allocation2 + $0xc8] sm:$0xff]
        %v674 = vld [vmem:[#allocation2 + $0xd0] sm:$0xff]
        %v675 = vld [vmem:[#allocation2 + $0xd8] sm:$0xff]
        %v676 = vld [vmem:[#allocation2 + $0xe0] sm:$0xff]
        %v677 = vld [vmem:[#allocation2 + $0xe8] sm:$0xff]
        %v678 = vld [vmem:[#allocation2 + $0xf0] sm:$0xff]
        %v679 = vld [vmem:[#allocation2 + $0xf8] sm:$0xff]
        %v680 = vld [vmem:[#allocation2 + $0x100] sm:$0xff]
        %v681 = vld [vmem:[#allocation2 + $0x108] sm:$0xff]
        %v682 = vld [vmem:[#allocation2 + $0x110] sm:$0xff]
        %v683 = vld [vmem:[#allocation2 + $0x118] sm:$0xff]
        %v684 = vld [vmem:[#allocation2 + $0x120] sm:$0xff]
        %v685 = vld [vmem:[#allocation2 + $0x128] sm:$0xff]
        %v686 = vld [vmem:[#allocation2 + $0x130] sm:$0xff]
        %v687 = vld [vmem:[#allocation2 + $0x138] sm:$0xf]
        %v688 = vld [vmem:[#allocation2 + $0x140] sm:$0xf]
        %v689 = vld [vmem:[#allocation2 + $0x148] sm:$0xf]
        %v690 = vld [vmem:[%s4] sm:$0xff]
        %v691 = vld [vmem:[%s4 + $0x8] sm:$0xff]
        %v692 = vld [vmem:[%s4 + $0x10] sm:$0xff]
        %v693 = vld [vmem:[%s4 + $0x18] sm:$0xff]
        %695 = vset.pattern.permute.xlu0 0
        %696 = vperm.xlu0 %695, %v690
        %v697 = vpop.permute.xlu0 %696
        %700 = vset.pattern.permute.xlu0 0
        %701 = vperm.xlu0 %700, %v691
        %v702 = vpop.permute.xlu0 %701
        %705 = vset.pattern.permute.xlu0 0
        %706 = vperm.xlu0 %705, %v692
        %v707 = vpop.permute.xlu0 %706
        %710 = vset.pattern.permute.xlu0 0
        %711 = vperm.xlu0 %710, %v693
        %v712 = vpop.permute.xlu0 %711
        %vm714 = vcmask 883712
        %v716 = vsel %vm714, %v644, 0
        %v719 = vsel %vm714, %v645, 0
        %v722 = vsel %vm714, %v646, 0
        %v725 = vsel %vm714, %v647, 0
        %vm727 = vcmask 1043456
        %v729 = vsel %vm727, %v687, 0
        %v732 = vsel %vm727, %v688, 0
        %v735 = vsel %vm727, %v689, 0
        %737 = vmatprep.subr.mxu0 %v649
        %738 = vmatpush1.msra.mxu0 %v648
        %739 = vmatprep.subr.mxu0 %v652
        %740 = vmatpush1.msra.mxu0 %v651
        %741 = vmatprep.subr.mxu0 %v655
        %742 = vmatpush1.msra.mxu0 %v654
        %743 = vmatprep.subr.mxu0 %v658
        %744 = vmatpush1.msra.mxu0 %v657
        %745 = vmatprep.subr.mxu0 %v661
        %746 = vmatpush1.msra.mxu0 %v660
        %747 = vmatprep.subr.mxu0 %v664
        %748 = vmatpush1.msra.mxu0 %v663
        %749 = vmatprep.subr.mxu0 %v667
        %750 = vmatpush1.msra.mxu0 %v666
        %751 = vmatprep.subr.mxu0 %v670
        %752 = vmatpush1.msra.mxu0 %v669
        %753 = vmatprep.subr.mxu0 %v673
        %754 = vmatpush1.msra.mxu0 %v672
        %755 = vmatprep.subr.mxu0 %v676
        %756 = vmatpush1.msra.mxu0 %v675
        %757 = vmatprep.subr.mxu0 %v679
        %758 = vmatpush1.msra.mxu0 %v678
        %759 = vmatprep.subr.mxu0 %v682
        %760 = vmatpush1.msra.mxu0 %v681
        %761 = vmatprep.subr.mxu0 %v685
        %762 = vmatpush1.msra.mxu0 %v684
        %763 = vmatprep.subr.mxu0 %v732
        %764 = vmatpush1.msra.mxu0 %v729
        %765 = vmatprep.subr.mxu0 0.0
        %766 = vmatpush1.msra.mxu0 0.0
        %767 = vmatprep.subr.mxu0 0.0
        %768 = vmatpush1.msra.mxu0 0.0
        %769 = vmatprep.subr.mxu0 0.0
        %770 = vmatpush1.msra.mxu0 0.0
        %771 = vmatprep.subr.mxu0 0.0
        %772 = vmatpush1.msra.mxu0 0.0
        %773 = vmatprep.subr.mxu0 0.0
        %774 = vmatpush1.msra.mxu0 0.0
        %775 = vmatprep.subr.mxu0 0.0
        %776 = vmatpush1.msra.mxu0 0.0
        %777 = vmatprep.subr.mxu0 0.0
        %778 = vmatpush1.msra.mxu0 0.0
        %779 = vmatprep.subr.mxu0 0.0
        %780 = vmatpush1.msra.mxu0 0.0
        %781 = vmatprep.subr.mxu0 0.0
        %782 = vmatpush1.msra.mxu0 0.0
        %783 = vmatprep.subr.mxu0 0.0
        %784 = vmatpush1.msra.mxu0 0.0
        %785 = vmatprep.subr.mxu0 0.0
        %786 = vmatpush1.msra.mxu0 0.0
        %787 = vmatprep.subr.mxu0 0.0
        %788 = vmatpush1.msra.mxu0 0.0
        %789 = vmatprep.subr.mxu0 0.0
        %790 = vmatpush1.msra.mxu0 0.0
        %791 = vmatprep.subr.mxu0 0.0
        %792 = vmatpush1.msra.mxu0 0.0
        %793 = vmatprep.subr.mxu0 0.0
        %794 = vmatpush1.msra.mxu0 0.0
        %795 = vmatprep.subr.mxu0 0.0
        %796 = vmatpush1.msra.mxu0 0.0
        %797 = vmatprep.subr.mxu0 0.0
        %798 = vmatpush1.msra.mxu0 0.0
        %799 = vmatprep.subr.mxu0 0.0
        %800 = vmatpush1.msra.mxu0 0.0
        %801 = vmatprep.mubr.f32.mxu0 0.0
        %802 = vmatmul.mubr.f32.gmra.mrb[0].mxu0 %v716
        %v803 = vpop.f32.mrb[0].mxu0
        %v804 = vadd.f32 %v697, %v803
        %v805 = vpop.f32.mrb[0].mxu0
        %v806 = vadd.f32 %v697, %v805
        %807 = vmatprep.mubr.f32.mxu0 0.0
        %808 = vmatmul.mubr.f32.gmra.mrb[0].mxu0 %v719
        %v809 = vpop.f32.mrb[0].mxu0
        %v810 = vadd.f32 %v702, %v809
        %v811 = vpop.f32.mrb[0].mxu0
        %v812 = vadd.f32 %v702, %v811
        %813 = vmatprep.mubr.f32.mxu0 0.0
        %814 = vmatmul.mubr.f32.gmra.mrb[0].mxu0 %v722
        %v815 = vpop.f32.mrb[0].mxu0
        %v816 = vadd.f32 %v707, %v815
        %v817 = vpop.f32.mrb[0].mxu0
        %v818 = vadd.f32 %v707, %v817
        %819 = vmatprep.mubr.f32.mxu0 0.0
        %820 = vmatmul.mubr.f32.gmra.mrb[0].mxu0 %v725
        %v821 = vpop.f32.mrb[0].mxu0
        %v822 = vadd.f32 %v712, %v821
        %v823 = vpop.f32.mrb[0].mxu0
        %v824 = vadd.f32 %v712, %v823
        %825 = vdwg.mxu0
        %826 = vmatprep.subr.mxu0 0.0
        %827 = vmatpush1.msra.mxu0 %v650
        %828 = vmatprep.subr.mxu0 0.0
        %829 = vmatpush1.msra.mxu0 %v653
        %830 = vmatprep.subr.mxu0 0.0
        %831 = vmatpush1.msra.mxu0 %v656
        %832 = vmatprep.subr.mxu0 0.0
        %833 = vmatpush1.msra.mxu0 %v659
        %834 = vmatprep.subr.mxu0 0.0
        %835 = vmatpush1.msra.mxu0 %v662
        %836 = vmatprep.subr.mxu0 0.0
        %837 = vmatpush1.msra.mxu0 %v665
        %838 = vmatprep.subr.mxu0 0.0
        %839 = vmatpush1.msra.mxu0 %v668
        %840 = vmatprep.subr.mxu0 0.0
        %841 = vmatpush1.msra.mxu0 %v671
        %842 = vmatprep.subr.mxu0 0.0
        %843 = vmatpush1.msra.mxu0 %v674
        %844 = vmatprep.subr.mxu0 0.0
        %845 = vmatpush1.msra.mxu0 %v677
        %846 = vmatprep.subr.mxu0 0.0
        %847 = vmatpush1.msra.mxu0 %v680
        %848 = vmatprep.subr.mxu0 0.0
        %849 = vmatpush1.msra.mxu0 %v683
        %850 = vmatprep.subr.mxu0 0.0
        %851 = vmatpush1.msra.mxu0 %v686
        %852 = vmatprep.subr.mxu0 0.0
        %853 = vmatpush1.msra.mxu0 %v735
        %854 = vmatprep.subr.mxu0 0.0
        %855 = vmatpush1.msra.mxu0 0.0
        %856 = vmatprep.subr.mxu0 0.0
        %857 = vmatpush1.msra.mxu0 0.0
        %858 = vmatprep.subr.mxu0 0.0
        %859 = vmatpush1.msra.mxu0 0.0
        %860 = vmatprep.subr.mxu0 0.0
        %861 = vmatpush1.msra.mxu0 0.0
        %862 = vmatprep.subr.mxu0 0.0
        %863 = vmatpush1.msra.mxu0 0.0
        %864 = vmatprep.subr.mxu0 0.0
        %865 = vmatpush1.msra.mxu0 0.0
        %866 = vmatprep.subr.mxu0 0.0
        %867 = vmatpush1.msra.mxu0 0.0
        %868 = vmatprep.subr.mxu0 0.0
        %869 = vmatpush1.msra.mxu0 0.0
        %870 = vmatprep.subr.mxu0 0.0
        %871 = vmatpush1.msra.mxu0 0.0
        %872 = vmatprep.subr.mxu0 0.0
        %873 = vmatpush1.msra.mxu0 0.0
        %874 = vmatprep.subr.mxu0 0.0
        %875 = vmatpush1.msra.mxu0 0.0
        %876 = vmatprep.subr.mxu0 0.0
        %877 = vmatpush1.msra.mxu0 0.0
        %878 = vmatprep.subr.mxu0 0.0
        %879 = vmatpush1.msra.mxu0 0.0
        %880 = vmatprep.subr.mxu0 0.0
        %881 = vmatpush1.msra.mxu0 0.0
        %882 = vmatprep.subr.mxu0 0.0
        %883 = vmatpush1.msra.mxu0 0.0
        %884 = vmatprep.subr.mxu0 0.0
        %885 = vmatpush1.msra.mxu0 0.0
        %886 = vmatprep.subr.mxu0 0.0
        %887 = vmatpush1.msra.mxu0 0.0
        %888 = vmatprep.subr.mxu0 0.0
        %889 = vmatpush1.msra.mxu0 0.0
        %890 = vmatprep.mubr.f32.mxu0 0.0
        %891 = vmatmul.mubr.f32.gmra.mrb[0].mxu0 %v716
        %v892 = vpop.f32.mrb[0].mxu0
        %v893 = vadd.f32 %v697, %v892
        %v894 = vpop.f32.mrb[0].mxu0
        %895 = vmatprep.mubr.f32.mxu0 0.0
        %896 = vmatmul.mubr.f32.gmra.mrb[0].mxu0 %v719
        %v897 = vpop.f32.mrb[0].mxu0
        %v898 = vadd.f32 %v702, %v897
        %v899 = vpop.f32.mrb[0].mxu0
        %900 = vmatprep.mubr.f32.mxu0 0.0
        %901 = vmatmul.mubr.f32.gmra.mrb[0].mxu0 %v722
        %v902 = vpop.f32.mrb[0].mxu0
        %v903 = vadd.f32 %v707, %v902
        %v904 = vpop.f32.mrb[0].mxu0
        %905 = vmatprep.mubr.f32.mxu0 0.0
        %906 = vmatmul.mubr.f32.gmra.mrb[0].mxu0 %v725
        %v907 = vpop.f32.mrb[0].mxu0
        %v908 = vadd.f32 %v712, %v907
        %v909 = vpop.f32.mrb[0].mxu0
        %910 = vdwg.mxu0
        %v911 = vxor.u32 %v804, 2147483648
        %v912 = vxor.u32 %v806, 2147483648
        %v913 = vxor.u32 %v893, 2147483648
        %v914 = vmul.f32 %v911, 1.442695
        %v915 = vpow.pop %v914
        %v916 = vmul.f32 %v912, 1.442695
        %v917 = vpow.pop %v916
        %v918 = vmul.f32 %v913, 1.442695
        %v919 = vpow.pop %v918
        %v920 = vadd.f32 %v915, 1.0
        %v921 = vadd.f32 %v917, 1.0
        %v922 = vadd.f32 %v919, 1.0
        %v923 = vrcp.pop %v920
        %v924 = vmul.f32 1.0, %v923
        %v925 = vrcp.pop %v921
        %v926 = vmul.f32 1.0, %v925
        %v927 = vrcp.pop %v922
        %v928 = vmul.f32 1.0, %v927
        %v929 = vxor.u32 %v810, 2147483648
        %v930 = vxor.u32 %v812, 2147483648
        %v931 = vxor.u32 %v898, 2147483648
        %v932 = vmul.f32 %v929, 1.442695
        %v933 = vpow.pop %v932
        %v934 = vmul.f32 %v930, 1.442695
        %v935 = vpow.pop %v934
        %v936 = vmul.f32 %v931, 1.442695
        %v937 = vpow.pop %v936
        %v938 = vadd.f32 %v933, 1.0
        %v939 = vadd.f32 %v935, 1.0
        %v940 = vadd.f32 %v937, 1.0
        %v941 = vrcp.pop %v938
        %v942 = vmul.f32 1.0, %v941
        %v943 = vrcp.pop %v939
        %v944 = vmul.f32 1.0, %v943
        %v945 = vrcp.pop %v940
        %v946 = vmul.f32 1.0, %v945
        %v947 = vxor.u32 %v816, 2147483648
        %v948 = vxor.u32 %v818, 2147483648
        %v949 = vxor.u32 %v903, 2147483648
        %v950 = vmul.f32 %v947, 1.442695
        %v951 = vpow.pop %v950
        %v952 = vmul.f32 %v948, 1.442695
        %v953 = vpow.pop %v952
        %v954 = vmul.f32 %v949, 1.442695
        %v955 = vpow.pop %v954
        %v956 = vadd.f32 %v951, 1.0
        %v957 = vadd.f32 %v953, 1.0
        %v958 = vadd.f32 %v955, 1.0
        %v959 = vrcp.pop %v956
        %v960 = vmul.f32 1.0, %v959
        %v961 = vrcp.pop %v957
        %v962 = vmul.f32 1.0, %v961
        %v963 = vrcp.pop %v958
        %v964 = vmul.f32 1.0, %v963
        %v965 = vtanh.pop %v822
        %v966 = vtanh.pop %v824
        %v967 = vtanh.pop %v908
        %v968 = vld [vmem:[%s265] sm:$0xff]
        %v969 = vld [vmem:[%s265 + $0x8] sm:$0xff]
        %v970 = vld [vmem:[%s265 + $0x10] sm:$0xff]
        %v971 = vmul.f32 %v942, %v968
        %v972 = vmul.f32 %v944, %v969
        %v973 = vmul.f32 %v946, %v970
        %v974 = vmul.f32 %v924, %v965
        %v975 = vmul.f32 %v926, %v966
        %v976 = vmul.f32 %v928, %v967
        %v977 = vadd.f32 %v971, %v974
        %v978 = vadd.f32 %v972, %v975
        %v979 = vadd.f32 %v973, %v976
        %v980 = vtanh.pop %v977
        %v981 = vtanh.pop %v978
        %v982 = vtanh.pop %v979
        %v983 = vmul.f32 %v960, %v980
        %v984 = vmul.f32 %v962, %v981
        %v985 = vmul.f32 %v964, %v982
        %986 = vst [vmem:[%s308] sm:$0xff] %v977
        %987 = vst [vmem:[%s308 + $0x8] sm:$0xff] %v978
        %988 = vst [vmem:[%s308 + $0x10] sm:$0xff] %v979
        %989 = vst [vmem:[%s301] sm:$0xff] %v983
        %990 = vst [vmem:[%s301 + $0x8] sm:$0xff] %v984
        %991 = vst [vmem:[%s301 + $0x10] sm:$0xff] %v985
        %s992 = sand.u32 %s155, 1
        %s993 = scalar_lea.sflag [#allocation5], %s992
        %s994 = sand.u32 %s155, 1
        %s995 = smul.addr %s994, 24
        %s996 = scalar_lea.vmem [#allocation6], %s995
        %s997 = sand.u32 %s181, 1
        %s998 = scalar_lea.sflag [#allocation8], %s997
        %s999 = sand.u32 %s181, 1
        %s1000 = smul.addr %s999, 24
        %s1001 = scalar_lea.vmem [#allocation7], %s1000
        // Predicated region
        $region45: #{tpu_custom_call.1} parent=39 // pred_check
          %p1002 = pneg %p165
        $region46: #{tpu_custom_call.1} parent=39 // pred_check_branch
          %1004 = sbr.rel (%p1002) target = $region48
        $region47: #{tpu_custom_call.1} parent=39 // pred_region
          %s1006 = ssub.s32 384, 384
          %1007 = vsyncadd %s993, %s1006
          %s1008 = smul.addr %s27, 3
          %s1009 = smul.addr %s1008, 128
          %s1010 = scalar_lea.hbm %s5, %s1009
          %s1012 = sshll.u32 %s996, 4
          %s1013 = int_to_ptr.vmem [resolvable:$true] %s1012
          %1015 = dma.vmem_to_hbm [thread:$0]  %s1013, 384, %s1010, %s993
        $region48: #{tpu_custom_call.1} parent=39 // pred_fallthru
          _
        // Predicated region
        $region49: #{tpu_custom_call.1} parent=39 // pred_check
          %p1016 = pneg %p191
        $region50: #{tpu_custom_call.1} parent=39 // pred_check_branch
          %1018 = sbr.rel (%p1016) target = $region52
        $region51: #{tpu_custom_call.1} parent=39 // pred_region
          %s1020 = ssub.s32 384, 384
          %1021 = vsyncadd %s998, %s1020
          %s1022 = smul.addr %s27, 3
          %s1023 = smul.addr %s1022, 128
          %s1024 = scalar_lea.hbm %s6, %s1023
          %s1026 = sshll.u32 %s1001, 4
          %s1027 = int_to_ptr.vmem [resolvable:$true] %s1026
          %1029 = dma.vmem_to_hbm [thread:$0]  %s1027, 384, %s1024, %s998
        $region52: #{tpu_custom_call.1} parent=39 // pred_fallthru
          _
      $region40: #{tpu_custom_call.1} parent=5 // pred_fallthru
        _
      %p1030 = scmp.le.s32.totalorder 2, %s22
      // Predicated region
      $region53: #{tpu_custom_call.1} parent=5 // pred_check
        %p1031 = pneg %p1030
      $region54: #{tpu_custom_call.1} parent=5 // pred_check_branch
        %1033 = sbr.rel (%p1031) target = $region56
      $region55: #{tpu_custom_call.1} parent=5 // pred_region
        %s1034 = ssub.s32 %s22, 2
        // Predicated region
        $region57: #{tpu_custom_call.1} parent=55 // pred_check
          %p1035 = pneg %p171
        $region58: #{tpu_custom_call.1} parent=55 // pred_check_branch
          %1037 = sbr.rel (%p1035) target = $region60
        $region59: #{tpu_custom_call.1} parent=55 // pred_region
          %s1038 = sand.u32 %s156, 1
          %s1039 = scalar_lea.sflag [#allocation5], %s1038
          %s1040 = sand.u32 %s156, 1
          %s1041 = smul.addr %s1040, 24
          %s1042 = scalar_lea.vmem [#allocation6], %s1041
          %1043 = dma.done %s1039, 384
        $region60: #{tpu_custom_call.1} parent=55 // pred_fallthru
          _
        // Predicated region
        $region61: #{tpu_custom_call.1} parent=55 // pred_check
          %p1044 = pneg %p197
        $region62: #{tpu_custom_call.1} parent=55 // pred_check_branch
          %1046 = sbr.rel (%p1044) target = $region64
        $region63: #{tpu_custom_call.1} parent=55 // pred_region
          %s1047 = sand.u32 %s182, 1
          %s1048 = scalar_lea.sflag [#allocation8], %s1047
          %s1049 = sand.u32 %s182, 1
          %s1050 = smul.addr %s1049, 24
          %s1051 = scalar_lea.vmem [#allocation7], %s1050
          %1052 = dma.done %s1048, 384
        $region64: #{tpu_custom_call.1} parent=55 // pred_fallthru
          _
      $region56: #{tpu_custom_call.1} parent=5 // pred_fallthru
        _
    $region6: #{tpu_custom_call.1} parent=1 // loop_footer
      %s26 = sadd.s32 1, %s22
    $region7: #{tpu_custom_call.1} parent=1 // loop_footer_branch
      %21 = sbr.rel target = $region3
    $region8: #{tpu_custom_call.1} parent=1 // loop_exit
      _
    %1053 = vsyncpa [#allocation4], 1
    %s1054 = scalar_lea.sflag [#allocation4], 1
    %1055 = vsyncpa %s1054, 1
    %1056 = vsyncpa [#allocation5], 1
    %s1057 = scalar_lea.sflag [#allocation5], 1
    %1058 = vsyncpa %s1057, 1
    %1059 = vsyncpa [#allocation8], 1
    %s1060 = scalar_lea.sflag [#allocation8], 1
    %1061 = vsyncpa %s1060, 1

</llo_original>
